<compile_context>
chip_gen: v7x
topology: tpu7x:2x2x1
jax: 0.10.0
libtpu: 0.0.40
codegen_flags: <defaults>
</compile_context>

<pallas_src>
import math

import jax
import jax.numpy as jnp
from jax.experimental import pallas as pl
from jax.experimental.pallas import tpu as pltpu

_LANE = 128
_SUBLANE = 16                      # bf16 packs two rows per sublane
_STEP_OVERHEAD_BYTES = 450_000     # ~0.35 us of HBM bandwidth per grid step


def _round_up(a, b):
    return (a + b - 1) // b * b


def _vmem_capacity_bytes():
    """Physical VMEM per core; conservative 64 MiB (v7x) if the query fails."""
    default = 64 * 2 ** 20
    try:
        info = pltpu.get_tpu_info()
        return int(getattr(info, "vmem_capacity_bytes", default))
    except Exception:
        return default


def _pad2(a, rows, cols, dtype):
    """Cast + zero-pad; no-op when the array is already aligned and cast."""
    r, c = a.shape
    if (r, c) == (rows, cols):
        return a if a.dtype == dtype else a.astype(dtype)
    return jnp.zeros((rows, cols), dtype).at[:r, :c].set(a.astype(dtype))


def _plan_tiles(N, rhs_w, nout_pad, acc_cols, itm, out_itm, w_vmem_bytes, budget):
    """Pick (tm, tk, rhs_resident) minimizing estimated HBM traffic under VMEM budget."""
    n16 = _round_up(N, _SUBLANE)
    nk128 = _round_up(N, _LANE)

    tm_cands = sorted({min(_round_up(t, _SUBLANE), n16)
                       for t in (64, 96, 128, 160, 192, 256, 320, 384, 448,
                                 512, 640, 768, 896, 1024)})
    tk_cands = {min(t, nk128) for t in (128, 256, 384, 512, 640, 768, 1024,
                                        1280, 1536, 2048)}
    if nk128 <= 4096:
        tk_cands.add(nk128)        # single K step when it fits
    tk_cands = sorted(tk_cands)

    best = None
    for resident in (True, False):
        for tm in tm_cands:
            for tk in tk_cands:
                n_pad_m = _round_up(N, tm)
                n_pad_k = _round_up(N, tk)
                grid_m = n_pad_m // tm
                grid_k = n_pad_k // tk
                rhs_rows = n_pad_k if resident else tk
                vmem = (2 * tm * tk * itm              # adj (double-buffered)
                        + 2 * rhs_rows * rhs_w * itm   # x / support
                        + w_vmem_bytes                 # W (fused path only, f32)
                        + 2 * tm * nout_pad * out_itm  # out (double-buffered)
                        + tm * acc_cols * 4            # f32 accumulator
                        + tm * nout_pad * 4)           # f32 finalize temp
                if vmem > budget:
                    continue
                # Estimated HBM traffic: adjacency-bandwidth-bound kernel.
                hbm = (n_pad_m * n_pad_k * itm
                       + n_pad_m * nout_pad * out_itm
                       + n_pad_k * rhs_w * itm * (1 if resident else grid_m)
                       + grid_m * grid_k * _STEP_OVERHEAD_BYTES)
                if grid_m < 2 and n16 >= 2 * _SUBLANE:
                    hbm = int(hbm * 1.9)   # single row tile => 2nd v7x TC idles
                key = (hbm, -tm, -tk)
                if best is None or key < best[0]:
                    best = (key, tm, tk, resident)

    if best is None:                       # pathological budget: minimal tiles
        return min(64, n16), _LANE, False
    return best[1], best[2], best[3]


def _make_gcn_kernel(*, fused, resident, grid_k, tk, acc_in_out):
    """Build the kernel body for one static configuration."""
    last_k = grid_k - 1

    def kernel(*refs):
        if fused:
            adj_ref, rhs_ref, w_ref = refs[0], refs[1], refs[2]
            out_ref = refs[3]
            acc_ref = refs[4] if len(refs) > 4 else None
        else:
            adj_ref, rhs_ref = refs[0], refs[1]
            w_ref = None
            out_ref = refs[2]
            acc_ref = refs[3] if len(refs) > 3 else None

        k = pl.program_id(1)

        if resident and grid_k > 1:
            # rhs is fully VMEM-resident: slice the K-chunk for this step.
            off = pl.multiple_of(k * tk, tk)
            rhs = rhs_ref[pl.ds(off, tk), :]
        else:
            rhs = rhs_ref[...]

        part = jnp.dot(adj_ref[...], rhs, preferred_element_type=jnp.float32)

        if grid_k == 1:
            # Single K step: no cross-step accumulation needed.
            if fused:
                part = jnp.dot(part, w_ref[...].astype(jnp.float32),
                               preferred_element_type=jnp.float32)
            out_ref[...] = part.astype(out_ref.dtype)
        elif fused:
            @pl.when(k == 0)
            def _init():
                acc_ref[...] = jnp.zeros_like(acc_ref)

            acc_ref[...] += part

            @pl.when(k == last_k)
            def _finalize():
                # f32 accumulator as LHS: no extra bf16 rounding; runs once per
                # row tile so the multi-pass f32 MXU cost is negligible.
                out = jnp.dot(acc_ref[...], w_ref[...].astype(jnp.float32),
                              preferred_element_type=jnp.float32)
                out_ref[...] = out.astype(out_ref.dtype)
        elif acc_in_out:
            # f32 output block is resident across the K axis: accumulate in place.
            @pl.when(k == 0)
            def _init():
                out_ref[...] = jnp.zeros_like(out_ref)

            out_ref[...] += part
        else:
            @pl.when(k == 0)
            def _init():
                acc_ref[...] = jnp.zeros_like(acc_ref)

            acc_ref[...] += part

            @pl.when(k == last_k)
            def _finalize():
                out_ref[...] = acc_ref[...].astype(out_ref.dtype)

    return kernel


def little_gcn_forward(x, adj, w, *, compute_dtype=jnp.bfloat16,
                       out_dtype=jnp.float32, tm=None, tk=None,
                       rhs_resident=None):
    """out = adj @ (x @ w) via a tiled Pallas TPU kernel.

    `adj` may be passed pre-cast to `compute_dtype` (recommended when the same
    adjacency is reused across layers / training steps) — the wrapper then
    skips the cast, and skips padding entirely when shapes are already aligned.
    `tm`/`tk`/`rhs_resident` override the automatic tiling plan (mainly for
    testing the different kernel paths).
    """
    N, F = x.shape
    Fw, nout = w.shape
    assert Fw == F and adj.shape == (N, N)

    nout_pad = _round_up(nout, _LANE)
    itm = jnp.dtype(compute_dtype).itemsize
    out_itm = jnp.dtype(out_dtype).itemsize

    fused = F <= nout_pad            # contract the N^2 matmul on the narrow side
    rhs_w = F if fused else nout_pad
    acc_cols = F if fused else nout_pad
    w_vmem_bytes = 2 * F * nout_pad * 4 if fused else 0   # f32 W, double-buffered

    cap = _vmem_capacity_bytes()
    budget = cap * 3 // 4            # tiling sized against physical VMEM - headroom

    tm_p, tk_p, res_p = _plan_tiles(N, rhs_w, nout_pad, acc_cols, itm, out_itm,
                                    w_vmem_bytes, budget)
    tm = tm_p if tm is None else min(_round_up(tm, _SUBLANE), _round_up(N, _SUBLANE))
    tk = tk_p if tk is None else min(_round_up(tk, _LANE), _round_up(N, _LANE))
    resident = res_p if rhs_resident is None else bool(rhs_resident)

    n_pad_m = _round_up(N, tm)
    n_pad_k = _round_up(N, tk)
    grid_m = n_pad_m // tm
    grid_k = n_pad_k // tk

    adj_p = _pad2(adj, n_pad_m, n_pad_k, compute_dtype)

    if fused:
        rhs_p = _pad2(x, n_pad_k, F, compute_dtype)
        w_p = _pad2(w, F, nout_pad, jnp.float32)   # W stays f32 (finalize-only)
        operands = (adj_p, rhs_p, w_p)
        rhs_spec = (pl.BlockSpec((n_pad_k, F), lambda i, k: (0, 0)) if resident
                    else pl.BlockSpec((tk, F), lambda i, k: (k, 0)))
        in_specs = [pl.BlockSpec((tm, tk), lambda i, k: (i, k)),   # adj tile
                    rhs_spec,                                      # x (resident/streamed)
                    pl.BlockSpec((F, nout_pad), lambda i, k: (0, 0))]  # W, constant
        flops = 2 * n_pad_m * n_pad_k * F + 2 * n_pad_m * F * nout_pad
    else:
        # support = x @ W precomputed in f32 (tiny matmul), one bf16 rounding.
        support = jnp.dot(x.astype(jnp.float32), w.astype(jnp.float32),
                          preferred_element_type=jnp.float32)
        rhs_p = _pad2(support, n_pad_k, nout_pad, compute_dtype)
        operands = (adj_p, rhs_p)
        rhs_spec = (pl.BlockSpec((n_pad_k, nout_pad), lambda i, k: (0, 0)) if resident
                    else pl.BlockSpec((tk, nout_pad), lambda i, k: (k, 0)))
        in_specs = [pl.BlockSpec((tm, tk), lambda i, k: (i, k)), rhs_spec]
        flops = 2 * n_pad_m * n_pad_k * nout_pad

    acc_in_out = (not fused) and grid_k > 1 and out_dtype == jnp.float32
    needs_acc = grid_k > 1 and (fused or not acc_in_out)
    scratch_shapes = ([pltpu.VMEM((tm, acc_cols), jnp.float32)] if needs_acc else [])

    kernel = _make_gcn_kernel(fused=fused, resident=resident, grid_k=grid_k,
                              tk=tk, acc_in_out=acc_in_out)

    rhs_rows = n_pad_k if resident else tk
    vmem_est = (2 * tm * tk * itm
                + 2 * rhs_rows * rhs_w * itm
                + w_vmem_bytes
                + 2 * tm * nout_pad * out_itm
                + tm * acc_cols * 4
                + tm * nout_pad * 4)
    vmem_limit = max(vmem_est * 5 // 4, vmem_est + (2 << 20), 32 << 20)
    vmem_limit = int(max(16 << 20, min(vmem_limit, cap - (4 << 20))))

    bytes_accessed = (n_pad_m * n_pad_k * itm
                      + n_pad_k * rhs_w * itm * (1 if resident else grid_m)
                      + n_pad_m * nout_pad * out_itm
                      + (F * nout_pad * 4 if fused else 0))

    out_p = pl.pallas_call(
        kernel,
        out_shape=jax.ShapeDtypeStruct((n_pad_m, nout_pad), out_dtype),
        grid_spec=pltpu.PrefetchScalarGridSpec(
            num_scalar_prefetch=0,
            grid=(grid_m, grid_k),
            in_specs=in_specs,
            out_specs=pl.BlockSpec((tm, nout_pad), lambda i, k: (i, 0)),
            scratch_shapes=scratch_shapes,
        ),
        compiler_params=pltpu.CompilerParams(
            dimension_semantics=("parallel", "arbitrary"),
            vmem_limit_bytes=vmem_limit,
        ),
        cost_estimate=pl.CostEstimate(
            flops=int(flops),
            transcendentals=0,
            bytes_accessed=int(bytes_accessed),
        ),
    )(*operands)

    return out_p[:N, :nout]


def reference_forward(x, adj, w):
    return adj @ (x @ w)


def _make_problem(key, N, nfeat, nout):
    kx, ka, kw = jax.random.split(key, 3)
    x = jax.random.normal(kx, (N, nfeat), dtype=jnp.float32)
    # Symmetric row-normalized-ish dense adjacency, deterministic.
    a_raw = (jax.random.uniform(ka, (N, N)) < 0.1).astype(jnp.float32)
    adj = a_raw + a_raw.T + jnp.eye(N, dtype=jnp.float32)
    adj = adj / jnp.maximum(adj.sum(axis=1, keepdims=True), 1.0)
    # GraphConvolution init: uniform(-1/sqrt(nout), 1/sqrt(nout)), no bias.
    stdv = 1.0 / math.sqrt(nout)
    w = jax.random.uniform(kw, (nfeat, nout), minval=-stdv, maxval=stdv,
                           dtype=jnp.float32)
    return x, adj, w


if __name__ == "__main__":
    # 1) fused path (nfeat <= padded nout), auto tiling (resident rhs, 1 K step).
    x, adj, w = _make_problem(jax.random.PRNGKey(0), N=128, nfeat=32, nout=64)
    out = jax.block_until_ready(little_gcn_forward(x, adj, w))
    ref = reference_forward(x, adj, w)
    assert out.shape == (128, 64)
    err = float(jnp.max(jnp.abs(out - ref)))
    assert err < 3e-2, f"fused path mismatch vs reference: max abs err {err}"

    # 2) precomputed-support path (nfeat > padded nout), auto tiling.
    x2, adj2, w2 = _make_problem(jax.random.PRNGKey(1), N=128, nfeat=256, nout=32)
    out2 = jax.block_until_ready(little_gcn_forward(x2, adj2, w2))
    ref2 = reference_forward(x2, adj2, w2)
    assert out2.shape == (128, 32)
    err2 = float(jnp.max(jnp.abs(out2 - ref2)))
    assert err2 < 1e-1, f"spmm path mismatch vs reference: max abs err {err2}"

    # 3) fused path, forced K-tiling with VMEM-resident rhs (exercises the
    #    in-kernel dynamic K-slice and the f32 accumulator + f32 finalize).
    x3, adj3, w3 = _make_problem(jax.random.PRNGKey(2), N=384, nfeat=32, nout=64)
    out3 = jax.block_until_ready(
        little_gcn_forward(x3, adj3, w3, tm=128, tk=128, rhs_resident=True))
    ref3 = reference_forward(x3, adj3, w3)
    err3 = float(jnp.max(jnp.abs(out3 - ref3)))
    assert err3 < 5e-2, f"fused K-tiled path mismatch: max abs err {err3}"

    # 4) spmm path, forced K-tiling with streamed rhs (exercises direct
    #    accumulation into the resident f32 output block, no scratch).
    x4, adj4, w4 = _make_problem(jax.random.PRNGKey(3), N=384, nfeat=256, nout=32)
    out4 = jax.block_until_ready(
        little_gcn_forward(x4, adj4, w4, tm=128, tk=128, rhs_resident=False))
    ref4 = reference_forward(x4, adj4, w4)
    err4 = float(jnp.max(jnp.abs(out4 - ref4)))
    assert err4 < 1e-1, f"spmm K-tiled path mismatch: max abs err {err4}"

    print("KERNEL_OK")
</pallas_src>

<mosaic_0001>
module attributes {stable_mosaic.version = 11 : i64} {
  func.func @kernel(%arg0: i32, %arg1: i32, %arg2: memref<64x128xbf16, #tpu.memory_space<vmem>>, %arg3: memref<128x32xbf16, #tpu.memory_space<vmem>>, %arg4: memref<32x128xf32, #tpu.memory_space<vmem>>, %arg5: memref<64x128xf32, #tpu.memory_space<vmem>>) attributes {dimension_semantics = [#tpu.dimension_semantics<parallel>, #tpu.dimension_semantics<arbitrary>], iteration_bounds = array<i64: 2, 1>, scalar_prefetch = 0 : i64, scratch_operands = 0 : i64, tpu.core_type = #tpu.core_type<tc>, window_params = [{transform_indices = @transform_0, window_bounds = array<i64: 64, 128>}, {pipeline_mode = #tpu.pipeline_mode<synchronous>, transform_indices = @transform_1, window_bounds = array<i64: 128, 32>}, {pipeline_mode = #tpu.pipeline_mode<synchronous>, transform_indices = @transform_2, window_bounds = array<i64: 32, 128>}, {transform_indices = @transform_3, window_bounds = array<i64: 64, 128>}]} {
    %c0 = arith.constant 0 : index
    %c0_0 = arith.constant 0 : index
    %0 = vector.load %arg3[%c0, %c0_0] : memref<128x32xbf16, #tpu.memory_space<vmem>>, vector<128x32xbf16>
    %c0_1 = arith.constant 0 : index
    %c0_2 = arith.constant 0 : index
    %1 = vector.load %arg2[%c0_1, %c0_2] : memref<64x128xbf16, #tpu.memory_space<vmem>>, vector<64x128xbf16>
    %cst = arith.constant dense<0.000000e+00> : vector<64x32xf32>
    %2 = tpu.matmul %1, %0, %cst {dimension_numbers = #tpu.dot_dimension_numbers<[1], [0], [0], [1], [0, 0, 1, 1], [], []>} : vector<64x128xbf16>, vector<128x32xbf16>, vector<64x32xf32> -> vector<64x32xf32>
    %c0_3 = arith.constant 0 : index
    %c0_4 = arith.constant 0 : index
    %3 = vector.load %arg4[%c0_3, %c0_4] : memref<32x128xf32, #tpu.memory_space<vmem>>, vector<32x128xf32>
    %cst_5 = arith.constant dense<0.000000e+00> : vector<64x128xf32>
    %4 = tpu.matmul %2, %3, %cst_5 {dimension_numbers = #tpu.dot_dimension_numbers<[1], [0], [0], [1], [0, 0, 1, 1], [], []>} : vector<64x32xf32>, vector<32x128xf32>, vector<64x128xf32> -> vector<64x128xf32>
    %c0_6 = arith.constant 0 : index
    %c0_7 = arith.constant 0 : index
    %5 = vector.load %arg5[%c0_6, %c0_7] : memref<64x128xf32, #tpu.memory_space<vmem>>, vector<64x128xf32>
    tpu.vector_store %arg5[%c0_6, %c0_7], %4 {strides = array<i32>} : memref<64x128xf32, #tpu.memory_space<vmem>>, vector<64x128xf32>,
    return
  }
  func.func @transform_0(%arg0: i32, %arg1: i32) -> (i32, i32) {
    %c0_i32 = arith.constant 0 : i32
    return %arg0, %arg1 : i32, i32
  }
  func.func @transform_1(%arg0: i32, %arg1: i32) -> (i32, i32) {
    %c0_i32 = arith.constant 0 : i32
    %c0_i32_0 = arith.constant 0 : i32
    %c0_i32_1 = arith.constant 0 : i32
    return %c0_i32, %c0_i32_0 : i32, i32
  }
  func.func @transform_2(%arg0: i32, %arg1: i32) -> (i32, i32) {
    %c0_i32 = arith.constant 0 : i32
    %c0_i32_0 = arith.constant 0 : i32
    %c0_i32_1 = arith.constant 0 : i32
    return %c0_i32, %c0_i32_0 : i32, i32
  }
  func.func @transform_3(%arg0: i32, %arg1: i32) -> (i32, i32) {
    %c0_i32 = arith.constant 0 : i32
    %c0_i32_0 = arith.constant 0 : i32
    return %arg0, %c0_i32 : i32, i32
  }
}

</mosaic_0001>

<llo_original>
// kernel: tpu_custom_call.1
$region0: #{tpu_custom_call.1}
  #allocation0 [shape = 'u32[]', space=smem, size = 0x4, offset = 0x4, fixed_abs, tag = 'smem constant byte address 0x4 - core index']
  #allocation1 [shape = 'u32[144,128]{1,0:T(1,128)}', space=vmem, size = 0x12000, scoped, tag = 'internal scratch']
  %s0 = inlined_call_operand.vmem [shape: bf16[128,128], index: 0, kind: input, shape index: {}]
  %s1 = inlined_call_operand.vmem [shape: bf16[128,32], index: 1, kind: input, shape index: {}]
  %s2 = inlined_call_operand.hbm [shape: f32[32,128], index: 2, kind: input, shape index: {}]
  %s3 = inlined_call_operand.hbm [shape: f32[128,128], index: 3, kind: output, shape index: {}]
  %s4 = sld [smem:[#allocation0]]
  $region49: #{tpu_custom_call.1} parent=0
    _
  %s6 = ssub.s32 1, %s4
  %s7 = scalar_select 0, %s6, %s4
  $region1: #{tpu_custom_call.1} parent=0
    #allocation2 [shape = 'u8[16384]{0}', space=vmem, size = 0x4000, scoped, tag = 'input window, operand 2, single buffered']
    #allocation3 [shape = 's32[2]{0}', space=sflag, size = 0x8, scoped, tag = 'scoped memory for tpu_custom_call.1']
    #allocation4 [shape = 's32[2]{0}', space=sflag, size = 0x8, scoped, tag = 'scoped memory for tpu_custom_call.1']
    #allocation5 [shape = 'u8[65536]{0}', space=vmem, size = 0x10000, scoped, tag = 'output window, operand 0']
    %8 = vsyncpa [#allocation3], 0
    %9 = vsyncpa [#allocation4], 0
    %s10 = scalar_lea.sflag [#allocation4], 1
    %11 = vsyncpa %s10, 0
    loop: start=0, step=1, limit=4
    $region2: #{tpu_custom_call.1} parent=1 // loop_pre_header
      _
    $region3: #{tpu_custom_call.1} parent=1 // loop_header
      %s13 = sphi 0, %s17
      %p14 = scmp.ge.s32.totalorder %s13, 4
      %s20 = sphi 0, %s32
      %s21 = sphi 0, %s28
      %s22 = sphi 0, %s20
      %s23 = sphi 0, %s21
      %s24 = sphi 0, %s22
      %s25 = sphi 0, %s23
      %s37 = sphi 0, %s39
      %s40 = sphi 0, %s37
      %s41 = sphi 0, %s40
      %s57 = sphi 0, %s41
      %s61 = sphi 0, %s61
      %s63 = sphi 0, %s61
      %s64 = sphi 0, %s63
      %s78 = sphi 0, %s64
      %s82 = sphi 0, %s82
      %s84 = sphi 0, %s82
      %s85 = sphi 0, %s84
      %s99 = sphi 0, %s85
      %s105 = sphi 0, %s107
      %s108 = sphi 0, %s105
      %s109 = sphi 0, %s108
      %s125 = sphi 0, %s109
    $region4: #{tpu_custom_call.1} parent=1 // loop_header_branch
      %16 = sbr.rel (%p14) target = $region8
    $region5: #{tpu_custom_call.1} parent=1 // loop_body
      %s18 = ssub.s32 %s13, 1
      %s19 = ssub.s32 %s13, 2
      %s26 = sadd.s32 1, %s21
      %p27 = scmp.ge.s32.totalorder %s26, 1
      %s28 = scalar_select %p27, 0, %s26
      %s29 = sadd.s32 1, %s20
      %s30 = scalar_select %p27, %s29, %s20
      %p31 = scmp.ge.s32.totalorder %s30, 2
      %s32 = scalar_select %p31, 0, %s30
      %s33 = ssub.s32 %s20, %s32
      %s34 = ssub.s32 %s21, %s28
      %s35 = sor.u32 %s33, %s34
      %p36 = scmp.eq.s32.totalorder %s35, 0
      %s38 = sadd.s32 %s37, 1
      %s39 = scalar_select %p36, %s37, %s38
      %p42 = pneg %p36
      %p43 = scmp.eq.s32.totalorder %s13, 1
      %p44 = por %p42, %p43
      %p45 = scmp.ne.s32.totalorder %s37, %s40
      %p46 = scmp.eq.s32.totalorder %s13, 0
      %p47 = por %p45, %p46
      %p48 = scmp.ne.s32.totalorder %s37, %s40
      %p49 = scmp.eq.s32.totalorder %s18, 1
      %p50 = por %p48, %p49
      %p51 = scmp.ne.s32.totalorder %s40, %s41
      %p52 = scmp.eq.s32.totalorder %s18, 0
      %p53 = por %p51, %p52
      %p54 = scmp.ne.s32.totalorder %s40, %s41
      %p55 = scmp.eq.s32.totalorder %s19, 1
      %p56 = por %p54, %p55
      %p58 = scmp.ne.s32.totalorder %s41, %s57
      %p59 = scmp.eq.s32.totalorder %s19, 0
      %p60 = por %p58, %p59
      %s62 = sadd.s32 %s61, 1
      %p65 = scmp.eq.s32.totalorder %s13, 1
      %p66 = scmp.ne.s32.totalorder %s61, %s63
      %p67 = scmp.eq.s32.totalorder %s13, 0
      %p68 = por %p66, %p67
      %p69 = scmp.ne.s32.totalorder %s61, %s63
      %p70 = scmp.eq.s32.totalorder %s18, 1
      %p71 = por %p69, %p70
      %p72 = scmp.ne.s32.totalorder %s63, %s64
      %p73 = scmp.eq.s32.totalorder %s18, 0
      %p74 = por %p72, %p73
      %p75 = scmp.ne.s32.totalorder %s63, %s64
      %p76 = scmp.eq.s32.totalorder %s19, 1
      %p77 = por %p75, %p76
      %p79 = scmp.ne.s32.totalorder %s64, %s78
      %p80 = scmp.eq.s32.totalorder %s19, 0
      %p81 = por %p79, %p80
      %s83 = sadd.s32 %s82, 1
      %p86 = scmp.eq.s32.totalorder %s13, 1
      %p87 = scmp.ne.s32.totalorder %s82, %s84
      %p88 = scmp.eq.s32.totalorder %s13, 0
      %p89 = por %p87, %p88
      %p90 = scmp.ne.s32.totalorder %s82, %s84
      %p91 = scmp.eq.s32.totalorder %s18, 1
      %p92 = por %p90, %p91
      %p93 = scmp.ne.s32.totalorder %s84, %s85
      %p94 = scmp.eq.s32.totalorder %s18, 0
      %p95 = por %p93, %p94
      %p96 = scmp.ne.s32.totalorder %s84, %s85
      %p97 = scmp.eq.s32.totalorder %s19, 1
      %p98 = por %p96, %p97
      %p100 = scmp.ne.s32.totalorder %s85, %s99
      %p101 = scmp.eq.s32.totalorder %s19, 0
      %p102 = por %p100, %p101
      %s103 = ssub.s32 %s20, %s32
      %p104 = scmp.eq.s32.totalorder %s103, 0
      %s106 = sadd.s32 %s105, 1
      %s107 = scalar_select %p104, %s105, %s106
      %p110 = pneg %p104
      %p111 = scmp.eq.s32.totalorder %s13, 1
      %p112 = por %p110, %p111
      %p113 = scmp.ne.s32.totalorder %s105, %s108
      %p114 = scmp.eq.s32.totalorder %s13, 0
      %p115 = por %p113, %p114
      %p116 = scmp.ne.s32.totalorder %s105, %s108
      %p117 = scmp.eq.s32.totalorder %s18, 1
      %p118 = por %p116, %p117
      %p119 = scmp.ne.s32.totalorder %s108, %s109
      %p120 = scmp.eq.s32.totalorder %s18, 0
      %p121 = por %p119, %p120
      %p122 = scmp.ne.s32.totalorder %s108, %s109
      %p123 = scmp.eq.s32.totalorder %s19, 1
      %p124 = por %p122, %p123
      %p126 = scmp.ne.s32.totalorder %s109, %s125
      %p127 = scmp.eq.s32.totalorder %s19, 0
      %p128 = por %p126, %p127
      %p129 = scmp.le.s32.totalorder 1, %s13
      %p130 = scmp.lt.s32.totalorder %s13, 3
      %p131 = pnand %p129, %p130
      %p132 = pneg %p131
      // Predicated region
      $region9: #{tpu_custom_call.1} parent=5 // pred_check
        _
      $region10: #{tpu_custom_call.1} parent=5 // pred_check_branch
        %134 = sbr.rel (%p131) target = $region12
      $region11: #{tpu_custom_call.1} parent=5 // pred_region
        %s135 = ssub.s32 %s13, 1
        // Predicated region
        $region13: #{tpu_custom_call.1} parent=11 // pred_check
          %p136 = pneg %p74
        $region14: #{tpu_custom_call.1} parent=11 // pred_check_branch
          %138 = sbr.rel (%p136) target = $region16
        $region15: #{tpu_custom_call.1} parent=11 // pred_region
          _
        $region16: #{tpu_custom_call.1} parent=11 // pred_fallthru
          _
        // Predicated region
        $region17: #{tpu_custom_call.1} parent=11 // pred_check
          %p139 = pneg %p95
        $region18: #{tpu_custom_call.1} parent=11 // pred_check_branch
          %141 = sbr.rel (%p139) target = $region20
        $region19: #{tpu_custom_call.1} parent=11 // pred_region
          %s143 = ssub.s32 512, 512
          %144 = vsyncadd [#allocation3], %s143
          %s145 = sshll.u32 [#allocation2], 4
          %s146 = int_to_ptr.vmem [resolvable:$true] %s145
          %151 = dma.hbm_to_vmem [thread:$0]  %s2, 512, %s146, [#allocation3], 128, 128, 8
        $region20: #{tpu_custom_call.1} parent=11 // pred_fallthru
          _
      $region12: #{tpu_custom_call.1} parent=5 // pred_fallthru
        _
      %p152 = scmp.lt.s32.totalorder %s13, 2
      // Predicated region
      $region21: #{tpu_custom_call.1} parent=5 // pred_check
        %p153 = pneg %p152
      $region22: #{tpu_custom_call.1} parent=5 // pred_check_branch
        %155 = sbr.rel (%p153) target = $region24
      $region23: #{tpu_custom_call.1} parent=5 // pred_region
        // Predicated region
        $region25: #{tpu_custom_call.1} parent=23 // pred_check
          %p156 = pneg %p47
        $region26: #{tpu_custom_call.1} parent=23 // pred_check_branch
          %158 = sbr.rel (%p156) target = $region28
        $region27: #{tpu_custom_call.1} parent=23 // pred_region
          %s159 = smul.u32 8, %s20
          %p160 = scmp.lt.s32.totalorder %s159, 15
          %s161 = scalar_select %p160, %s159, 15
          %p162 = scmp.lt.s32.totalorder %s21, 0
          %s163 = scalar_select %p162, %s21, 0
          %s164 = sadd.s32 %s163, %s161
          %s165 = smul.addr %s164, 4
          %s166 = scalar_lea.vmem %s0, %s165
          %s167 = smul.u32 8, %s20
        $region28: #{tpu_custom_call.1} parent=23 // pred_fallthru
          _
      $region24: #{tpu_custom_call.1} parent=5 // pred_fallthru
        _
      %p168 = scmp.le.s32.totalorder 1, %s13
      %p169 = scmp.lt.s32.totalorder %s13, 3
      %p170 = pnand %p168, %p169
      %p171 = pneg %p170
      // Predicated region
      $region29: #{tpu_custom_call.1} parent=5 // pred_check
        _
      $region30: #{tpu_custom_call.1} parent=5 // pred_check_branch
        %173 = sbr.rel (%p170) target = $region32
      $region31: #{tpu_custom_call.1} parent=5 // pred_region
        %s174 = ssub.s32 %s13, 1
        // Predicated region
        $region33: #{tpu_custom_call.1} parent=31 // pred_check
          %p175 = pneg %p95
        $region34: #{tpu_custom_call.1} parent=31 // pred_check_branch
          %177 = sbr.rel (%p175) target = $region36
        $region35: #{tpu_custom_call.1} parent=31 // pred_region
          %178 = dma.done [#allocation3], 512
        $region36: #{tpu_custom_call.1} parent=31 // pred_fallthru
          _
        %s179 = smul.u32 8, %s22
        %p180 = scmp.lt.s32.totalorder %s179, 15
        %s181 = scalar_select %p180, %s179, 15
        %p182 = scmp.lt.s32.totalorder %s23, 0
        %s183 = scalar_select %p182, %s23, 0
        %s184 = sadd.s32 %s183, %s181
        %s185 = smul.addr %s184, 4
        %s186 = scalar_lea.vmem %s0, %s185
        %p187 = pneg %p53
        %p188 = pneg %p50
        %p189 = pneg %p74
        %p190 = pneg %p71
        %p191 = pneg %p95
        %p192 = pneg %p92
        %p193 = pneg %p121
        %p194 = pneg %p118
        %s195 = sand.u32 %s108, 1
        %s196 = scalar_lea.sflag [#allocation4], %s195
        %s197 = sand.u32 %s108, 1
        %s198 = smul.addr %s197, 64
        %s199 = scalar_lea.vmem [#allocation5], %s198
        %s200 = smul.u32 8, %s22
        %p201 = scmp.lt.s32.totalorder %s200, 15
        %s202 = scalar_select %p201, %s200, 15
        %p203 = scmp.lt.s32.totalorder %s23, 0
        %s204 = scalar_select %p203, %s23, 0
        %s205 = sadd.s32 %s204, %s202
        %s206 = smul.addr %s205, 4
        %s207 = scalar_lea.vmem %s0, %s206
        %s208 = smul.u32 8, %s22
        %s209 = smul.u32 8, %s22
        %v211 = vld [vmem:[%s1] sm:$0xf]
        %v212 = vld [vmem:[%s1 + $0x4] sm:$0xf]
        %v213 = vld [vmem:[%s1 + $0x8] sm:$0xf]
        %v214 = vld [vmem:[%s1 + $0xc] sm:$0xf]
        %v215 = vld [vmem:[%s1 + $0x10] sm:$0xf]
        %v216 = vld [vmem:[%s1 + $0x14] sm:$0xf]
        %v217 = vld [vmem:[%s1 + $0x18] sm:$0xf]
        %v218 = vld [vmem:[%s1 + $0x1c] sm:$0xf]
        %v219 = vld [vmem:[%s1 + $0x20] sm:$0xf]
        %v220 = vld [vmem:[%s1 + $0x24] sm:$0xf]
        %v221 = vld [vmem:[%s1 + $0x28] sm:$0xf]
        %v222 = vld [vmem:[%s1 + $0x2c] sm:$0xf]
        %v223 = vld [vmem:[%s1 + $0x30] sm:$0xf]
        %v224 = vld [vmem:[%s1 + $0x34] sm:$0xf]
        %v225 = vld [vmem:[%s1 + $0x38] sm:$0xf]
        %v226 = vld [vmem:[%s1 + $0x3c] sm:$0xf]
        %v227 = vld [vmem:[%s207] sm:$0xf]
        %v228 = vld [vmem:[%s207 + $0x4] sm:$0xf]
        %v229 = vld [vmem:[%s207 + $0x8] sm:$0xf]
        %v230 = vld [vmem:[%s207 + $0xc] sm:$0xf]
        %v231 = vld [vmem:[%s207 + $0x10] sm:$0xf]
        %v232 = vld [vmem:[%s207 + $0x14] sm:$0xf]
        %v233 = vld [vmem:[%s207 + $0x18] sm:$0xf]
        %v234 = vld [vmem:[%s207 + $0x1c] sm:$0xf]
        %v243 = vunpack.c.l.b16 %v227
        %v244 = vunpack.c.l.b16 %v228
        %v245 = vunpack.c.l.b16 %v229
        %v246 = vunpack.c.l.b16 %v230
        %v247 = vunpack.c.l.b16 %v231
        %v248 = vunpack.c.l.b16 %v232
        %v249 = vunpack.c.l.b16 %v233
        %v250 = vunpack.c.l.b16 %v234
        %v251 = vpack.c.b16 %v244, %v243
        %v252 = vpack.c.b16 %v246, %v245
        %v253 = vpack.c.b16 %v248, %v247
        %v254 = vpack.c.b16 %v250, %v249
        %v275 = vunpack.c.l.b16 %v211
        %v276 = vunpack.c.l.b16 %v212
        %v277 = vunpack.c.l.b16 %v213
        %v278 = vunpack.c.l.b16 %v214
        %v279 = vunpack.c.l.b16 %v215
        %v280 = vunpack.c.l.b16 %v216
        %v281 = vunpack.c.l.b16 %v217
        %v282 = vunpack.c.l.b16 %v218
        %v283 = vunpack.c.l.b16 %v219
        %v284 = vunpack.c.l.b16 %v220
        %v285 = vunpack.c.l.b16 %v221
        %v286 = vunpack.c.l.b16 %v222
        %v287 = vunpack.c.l.b16 %v223
        %v288 = vunpack.c.l.b16 %v224
        %v289 = vunpack.c.l.b16 %v225
        %v290 = vunpack.c.l.b16 %v226
        %v291 = vpack.c.b16 %v276, %v275
        %v292 = vpack.c.b16 %v278, %v277
        %v293 = vpack.c.b16 %v280, %v279
        %v294 = vpack.c.b16 %v282, %v281
        %v295 = vpack.c.b16 %v284, %v283
        %v296 = vpack.c.b16 %v286, %v285
        %v297 = vpack.c.b16 %v288, %v287
        %v298 = vpack.c.b16 %v290, %v289
        %307 = vmatprep.subr.bf16.mxu0 0
        %308 = vmatpush1.bf16.msra.mxu0 %v291
        %309 = vmatprep.subr.bf16.mxu0 0
        %310 = vmatpush1.bf16.msra.mxu0 %v292
        %311 = vmatprep.subr.bf16.mxu0 0
        %312 = vmatpush1.bf16.msra.mxu0 %v293
        %313 = vmatprep.subr.bf16.mxu0 0
        %314 = vmatpush1.bf16.msra.mxu0 %v294
        %315 = vmatprep.subr.bf16.mxu0 0
        %316 = vmatpush1.bf16.msra.mxu0 %v295
        %317 = vmatprep.subr.bf16.mxu0 0
        %318 = vmatpush1.bf16.msra.mxu0 %v296
        %319 = vmatprep.subr.bf16.mxu0 0
        %320 = vmatpush1.bf16.msra.mxu0 %v297
        %321 = vmatprep.subr.bf16.mxu0 0
        %322 = vmatpush1.bf16.msra.mxu0 %v298
        %323 = vmatprep.subr.bf16.mxu0 0
        %324 = vmatpush1.bf16.msra.mxu0 0
        %325 = vmatprep.subr.bf16.mxu0 0
        %326 = vmatpush1.bf16.msra.mxu0 0
        %327 = vmatprep.subr.bf16.mxu0 0
        %328 = vmatpush1.bf16.msra.mxu0 0
        %329 = vmatprep.subr.bf16.mxu0 0
        %330 = vmatpush1.bf16.msra.mxu0 0
        %331 = vmatprep.subr.bf16.mxu0 0
        %332 = vmatpush1.bf16.msra.mxu0 0
        %333 = vmatprep.subr.bf16.mxu0 0
        %334 = vmatpush1.bf16.msra.mxu0 0
        %335 = vmatprep.subr.bf16.mxu0 0
        %336 = vmatpush1.bf16.msra.mxu0 0
        %337 = vmatprep.subr.bf16.mxu0 0
        %338 = vmatpush1.bf16.msra.mxu0 0
        %339 = vmatprep.mubr.bf16.mxu0 0
        %340 = vmatmul.mubr.bf16.gmra.mrb[0].mxu0 %v251
        %v341 = vpop.f32.mrb[0].mxu0
        %v342 = vadd.f32 0.0, %v341
        %v343 = vpop.f32.mrb[0].mxu0
        %v344 = vpop.f32.mrb[0].mxu0
        %v345 = vadd.f32 0.0, %v344
        %v346 = vpop.f32.mrb[0].mxu0
        %347 = vmatprep.mubr.bf16.mxu0 0
        %348 = vmatmul.mubr.bf16.gmra.mrb[0].mxu0 %v252
        %v349 = vpop.f32.mrb[0].mxu0
        %v350 = vadd.f32 0.0, %v349
        %v351 = vpop.f32.mrb[0].mxu0
        %v352 = vpop.f32.mrb[0].mxu0
        %v353 = vadd.f32 0.0, %v352
        %v354 = vpop.f32.mrb[0].mxu0
        %355 = vmatprep.mubr.bf16.mxu0 0
        %356 = vmatmul.mubr.bf16.gmra.mrb[0].mxu0 %v253
        %v357 = vpop.f32.mrb[0].mxu0
        %v358 = vadd.f32 0.0, %v357
        %v359 = vpop.f32.mrb[0].mxu0
        %v360 = vpop.f32.mrb[0].mxu0
        %v361 = vadd.f32 0.0, %v360
        %v362 = vpop.f32.mrb[0].mxu0
        %363 = vmatprep.mubr.bf16.mxu0 0
        %364 = vmatmul.mubr.bf16.gmra.mrb[0].mxu0 %v254
        %v365 = vpop.f32.mrb[0].mxu0
        %v366 = vadd.f32 0.0, %v365
        %v367 = vpop.f32.mrb[0].mxu0
        %v368 = vpop.f32.mrb[0].mxu0
        %v369 = vadd.f32 0.0, %v368
        %v370 = vpop.f32.mrb[0].mxu0
        %371 = vdwg.mxu0
        %v372 = vld [vmem:[#allocation2] sm:$0xff]
        %v373 = vld [vmem:[#allocation2 + $0x8] sm:$0xff]
        %v374 = vld [vmem:[#allocation2 + $0x10] sm:$0xff]
        %v375 = vld [vmem:[#allocation2 + $0x18] sm:$0xff]
        %vm376 = vcmask 261120
        %v378 = vsel %vm376, %v342, 0
        %v381 = vsel %vm376, %v345, 0
        %v384 = vsel %vm376, %v350, 0
        %v387 = vsel %vm376, %v353, 0
        %v390 = vsel %vm376, %v358, 0
        %v393 = vsel %vm376, %v361, 0
        %v396 = vsel %vm376, %v366, 0
        %v399 = vsel %vm376, %v369, 0
        %401 = vmatprep.subr.mxu0 0.0
        %402 = vmatpush1.msra.mxu0 %v372
        %403 = vmatprep.subr.mxu0 0.0
        %404 = vmatpush1.msra.mxu0 %v373
        %405 = vmatprep.subr.mxu0 0.0
        %406 = vmatpush1.msra.mxu0 %v374
        %407 = vmatprep.subr.mxu0 0.0
        %408 = vmatpush1.msra.mxu0 %v375
        %409 = vmatprep.subr.mxu0 0.0
        %410 = vmatpush1.msra.mxu0 0.0
        %411 = vmatprep.subr.mxu0 0.0
        %412 = vmatpush1.msra.mxu0 0.0
        %413 = vmatprep.subr.mxu0 0.0
        %414 = vmatpush1.msra.mxu0 0.0
        %415 = vmatprep.subr.mxu0 0.0
        %416 = vmatpush1.msra.mxu0 0.0
        %417 = vmatprep.subr.mxu0 0.0
        %418 = vmatpush1.msra.mxu0 0.0
        %419 = vmatprep.subr.mxu0 0.0
        %420 = vmatpush1.msra.mxu0 0.0
        %421 = vmatprep.subr.mxu0 0.0
        %422 = vmatpush1.msra.mxu0 0.0
        %423 = vmatprep.subr.mxu0 0.0
        %424 = vmatpush1.msra.mxu0 0.0
        %425 = vmatprep.subr.mxu0 0.0
        %426 = vmatpush1.msra.mxu0 0.0
        %427 = vmatprep.subr.mxu0 0.0
        %428 = vmatpush1.msra.mxu0 0.0
        %429 = vmatprep.subr.mxu0 0.0
        %430 = vmatpush1.msra.mxu0 0.0
        %431 = vmatprep.subr.mxu0 0.0
        %432 = vmatpush1.msra.mxu0 0.0
        %433 = vmatprep.subr.mxu0 0.0
        %434 = vmatpush1.msra.mxu0 0.0
        %435 = vmatprep.subr.mxu0 0.0
        %436 = vmatpush1.msra.mxu0 0.0
        %437 = vmatprep.subr.mxu0 0.0
        %438 = vmatpush1.msra.mxu0 0.0
        %439 = vmatprep.subr.mxu0 0.0
        %440 = vmatpush1.msra.mxu0 0.0
        %441 = vmatprep.subr.mxu0 0.0
        %442 = vmatpush1.msra.mxu0 0.0
        %443 = vmatprep.subr.mxu0 0.0
        %444 = vmatpush1.msra.mxu0 0.0
        %445 = vmatprep.subr.mxu0 0.0
        %446 = vmatpush1.msra.mxu0 0.0
        %447 = vmatprep.subr.mxu0 0.0
        %448 = vmatpush1.msra.mxu0 0.0
        %449 = vmatprep.subr.mxu0 0.0
        %450 = vmatpush1.msra.mxu0 0.0
        %451 = vmatprep.subr.mxu0 0.0
        %452 = vmatpush1.msra.mxu0 0.0
        %453 = vmatprep.subr.mxu0 0.0
        %454 = vmatpush1.msra.mxu0 0.0
        %455 = vmatprep.subr.mxu0 0.0
        %456 = vmatpush1.msra.mxu0 0.0
        %457 = vmatprep.subr.mxu0 0.0
        %458 = vmatpush1.msra.mxu0 0.0
        %459 = vmatprep.subr.mxu0 0.0
        %460 = vmatpush1.msra.mxu0 0.0
        %461 = vmatprep.subr.mxu0 0.0
        %462 = vmatpush1.msra.mxu0 0.0
        %463 = vmatprep.subr.mxu0 0.0
        %464 = vmatpush1.msra.mxu0 0.0
        %465 = vmatprep.mubr.f32.mxu0 0.0
        %466 = vmatmul.mubr.f32.gmra.mrb[0].mxu0 %v378
        %v467 = vpop.f32.mrb[0].mxu0
        %v468 = vadd.f32 0.0, %v467
        %v469 = vpop.f32.mrb[0].mxu0
        %470 = vmatprep.mubr.f32.mxu0 0.0
        %471 = vmatmul.mubr.f32.gmra.mrb[0].mxu0 %v381
        %v472 = vpop.f32.mrb[0].mxu0
        %v473 = vadd.f32 0.0, %v472
        %v474 = vpop.f32.mrb[0].mxu0
        %475 = vmatprep.mubr.f32.mxu0 0.0
        %476 = vmatmul.mubr.f32.gmra.mrb[0].mxu0 %v384
        %v477 = vpop.f32.mrb[0].mxu0
        %v478 = vadd.f32 0.0, %v477
        %v479 = vpop.f32.mrb[0].mxu0
        %480 = vmatprep.mubr.f32.mxu0 0.0
        %481 = vmatmul.mubr.f32.gmra.mrb[0].mxu0 %v387
        %v482 = vpop.f32.mrb[0].mxu0
        %v483 = vadd.f32 0.0, %v482
        %v484 = vpop.f32.mrb[0].mxu0
        %485 = vmatprep.mubr.f32.mxu0 0.0
        %486 = vmatmul.mubr.f32.gmra.mrb[0].mxu0 %v390
        %v487 = vpop.f32.mrb[0].mxu0
        %v488 = vadd.f32 0.0, %v487
        %v489 = vpop.f32.mrb[0].mxu0
        %490 = vmatprep.mubr.f32.mxu0 0.0
        %491 = vmatmul.mubr.f32.gmra.mrb[0].mxu0 %v393
        %v492 = vpop.f32.mrb[0].mxu0
        %v493 = vadd.f32 0.0, %v492
        %v494 = vpop.f32.mrb[0].mxu0
        %495 = vmatprep.mubr.f32.mxu0 0.0
        %496 = vmatmul.mubr.f32.gmra.mrb[0].mxu0 %v396
        %v497 = vpop.f32.mrb[0].mxu0
        %v498 = vadd.f32 0.0, %v497
        %v499 = vpop.f32.mrb[0].mxu0
        %500 = vmatprep.mubr.f32.mxu0 0.0
        %501 = vmatmul.mubr.f32.gmra.mrb[0].mxu0 %v399
        %v502 = vpop.f32.mrb[0].mxu0
        %v503 = vadd.f32 0.0, %v502
        %v504 = vpop.f32.mrb[0].mxu0
        %505 = vdwg.mxu0
        %506 = vst [vmem:[%s199] sm:$0xff] %v468
        %507 = vst [vmem:[%s199 + $0x8] sm:$0xff] %v473
        %508 = vst [vmem:[%s199 + $0x10] sm:$0xff] %v478
        %509 = vst [vmem:[%s199 + $0x18] sm:$0xff] %v483
        %510 = vst [vmem:[%s199 + $0x20] sm:$0xff] %v488
        %511 = vst [vmem:[%s199 + $0x28] sm:$0xff] %v493
        %512 = vst [vmem:[%s199 + $0x30] sm:$0xff] %v498
        %513 = vst [vmem:[%s199 + $0x38] sm:$0xff] %v503
        %s514 = sand.u32 %s108, 1
        %s515 = scalar_lea.sflag [#allocation4], %s514
        %s516 = sand.u32 %s108, 1
        %s517 = smul.addr %s516, 64
        %s518 = scalar_lea.vmem [#allocation5], %s517
        // Predicated region
        $region37: #{tpu_custom_call.1} parent=31 // pred_check
          %p519 = pneg %p118
        $region38: #{tpu_custom_call.1} parent=31 // pred_check_branch
          %521 = sbr.rel (%p519) target = $region40
        $region39: #{tpu_custom_call.1} parent=31 // pred_region
          %s522 = smul.u32 8, %s22
          %s524 = ssub.s32 1024, 1024
          %525 = vsyncadd %s515, %s524
          %s526 = smul.addr %s522, 128
          %s527 = scalar_lea.hbm %s3, %s526
          %s528 = sshll.u32 %s518, 4
          %s529 = int_to_ptr.vmem [resolvable:$true] %s528
          %534 = dma.vmem_to_hbm [thread:$0]  %s529, 1024, %s527, %s515, 128, 128, 8
        $region40: #{tpu_custom_call.1} parent=31 // pred_fallthru
          _
      $region32: #{tpu_custom_call.1} parent=5 // pred_fallthru
        _
      %p535 = scmp.le.s32.totalorder 2, %s13
      // Predicated region
      $region41: #{tpu_custom_call.1} parent=5 // pred_check
        %p536 = pneg %p535
      $region42: #{tpu_custom_call.1} parent=5 // pred_check_branch
        %538 = sbr.rel (%p536) target = $region44
      $region43: #{tpu_custom_call.1} parent=5 // pred_region
        %s539 = ssub.s32 %s13, 2
        // Predicated region
        $region45: #{tpu_custom_call.1} parent=43 // pred_check
          %p540 = pneg %p124
        $region46: #{tpu_custom_call.1} parent=43 // pred_check_branch
          %542 = sbr.rel (%p540) target = $region48
        $region47: #{tpu_custom_call.1} parent=43 // pred_region
          %s543 = sand.u32 %s109, 1
          %s544 = scalar_lea.sflag [#allocation4], %s543
          %s545 = sand.u32 %s109, 1
          %s546 = smul.addr %s545, 64
          %s547 = scalar_lea.vmem [#allocation5], %s546
          %548 = dma.done %s544, 1024
        $region48: #{tpu_custom_call.1} parent=43 // pred_fallthru
          _
      $region44: #{tpu_custom_call.1} parent=5 // pred_fallthru
        _
    $region6: #{tpu_custom_call.1} parent=1 // loop_footer
      %s17 = sadd.s32 1, %s13
    $region7: #{tpu_custom_call.1} parent=1 // loop_footer_branch
      %12 = sbr.rel target = $region3
    $region8: #{tpu_custom_call.1} parent=1 // loop_exit
      _
    %549 = vsyncpa [#allocation3], 1
    %s550 = scalar_lea.sflag [#allocation3], 1
    %551 = vsyncpa %s550, 1
    %552 = vsyncpa [#allocation4], 1
    %s553 = scalar_lea.sflag [#allocation4], 1
    %554 = vsyncpa %s553, 1

</llo_original>
